<compile_context>
chip_gen: v6e
topology: v6e:2x2x1
jax: 0.10.0
libtpu: 0.0.40
codegen_flags: <defaults>
</compile_context>

<pallas_src>
import jax
import jax.numpy as jnp
from jax.experimental import pallas as pl
from jax.experimental.pallas import tpu as pltpu
import numpy as np

N_LAYERS = 3
LN_EPS = 1e-5        # LayerNorm eps
GEN_EPS = 1e-7       # GENConv message eps
MSG_CLAMP = 40.0     # fixed exp clamp (any constant shift cancels in num/den)
LANE = 128


def _round_up(n, m):
    return ((n + m - 1) // m) * m


def _pad2(a, rows, cols):
    r, c = a.shape
    return jnp.pad(a, ((0, rows - r), (0, cols - c)))


def _pick_row_tile(n_nodes):
    """256 rows on the 2x256^2-MXU chips (v6e/v7x) when the graph is big enough to give
    both TensorCores >= 1 tile; 128 otherwise (v5e MXU is 4x128^2)."""
    try:
        kind = jax.devices()[0].device_kind.lower()
    except Exception:
        kind = ""
    wide_mxu = ("v6" in kind) or ("v7" in kind) or ("7x" in kind)
    return 256 if (wide_mxu and n_nodes >= 512) else 128


def _vmem_limit_bytes():
    """~3/4 of physical VMEM: ~96 MiB on v5e/v6e (128 MiB), ~48 MiB on v7x (64 MiB)."""
    cap = 64 * 1024 * 1024
    try:
        cap = int(pltpu.get_tpu_info().vmem_capacity_bytes)
    except Exception:
        pass
    return min(cap * 3 // 4, 100 * 1024 * 1024)


# -------------------------- in-kernel helpers --------------------------------------
def _ln_relu(h, gamma, beta, inv_hid):
    # LayerNorm over the true `hid` features + ReLU (Dropout is identity in eval).
    # Padded feature columns of h are exactly 0 and gamma/beta are zero-padded, so the
    # sums only see real features and padded output lanes are zeroed by gamma
    # (the iota mask of the previous version is removed -> one fewer VPU pass).
    mu = jnp.sum(h, axis=-1, keepdims=True) * inv_hid
    ex2 = jnp.sum(h * h, axis=-1, keepdims=True) * inv_hid
    var = jnp.maximum(ex2 - mu * mu, 0.0)
    hn = (h - mu) * jax.lax.rsqrt(var + LN_EPS) * gamma + beta
    return jnp.maximum(hn, 0.0)


def _store_messages(msg_ref, hr, hp):
    # GENConv softmax(t=1) terms: msgcat = [exp(m)*m, exp(m)],  m = relu(x)+eps.
    # Fixed clamp replaces the per-destination max subtraction (shift cancels in num/den).
    msg = hr + GEN_EPS                                # hr >= 0 already
    e = jnp.exp(jnp.minimum(msg, MSG_CLAMP))
    msg_ref[:, :hp] = (e * msg).astype(jnp.bfloat16)  # 128-aligned lane stores
    msg_ref[:, hp:] = e.astype(jnp.bfloat16)


# ------------------------------- kernels --------------------------------------------
def _make_prepass_kernel(hp, hid, with_encoder):
    """Per-layer message pre-pass over source-row tiles (computed ONCE per layer).
    Layer 0 additionally fuses the node-encoder matmul and writes h."""
    inv_hid = 1.0 / float(hid)

    if with_encoder:
        def kernel(x_ref, we_ref, be_ref, g_ref, b_ref, h_ref, msg_ref):
            h = jnp.dot(x_ref[...].astype(jnp.bfloat16), we_ref[...],
                        preferred_element_type=jnp.float32) + be_ref[...]
            h_ref[...] = h
            hr = _ln_relu(h, g_ref[...], b_ref[...], inv_hid)
            _store_messages(msg_ref, hr, hp)
    else:
        def kernel(h_ref, g_ref, b_ref, msg_ref):
            hr = _ln_relu(h_ref[...], g_ref[...], b_ref[...], inv_hid)
            _store_messages(msg_ref, hr, hp)
    return kernel


def _make_layer_kernel(hp, hid, with_classifier):
    """Aggregation (K-tiled over source tiles) + GENConv MLP + 'res+' residual.
    Last layer fuses the classifier matmul into the finalize step."""
    inv_hid = 1.0 / float(hid)

    def kernel(h_ref, a_ref, msg_ref, g_ref, b_ref,
               w1_ref, b1_ref, w2_ref, b2_ref, *rest):
        if with_classifier:
            wc_ref, bc_ref, o_ref, acc_ref = rest
        else:
            o_ref, acc_ref = rest

        k = pl.program_id(1)

        @pl.when(k == 0)
        def _():
            acc_ref[...] = jnp.zeros_like(acc_ref)

        # A stored int8 in HBM -> widen on the VPU, matmul in bf16 (f32 accumulate).
        a = a_ref[...].astype(jnp.float32).astype(jnp.bfloat16)
        acc_ref[...] += jnp.dot(a, msg_ref[...], preferred_element_type=jnp.float32)

        @pl.when(k == pl.num_programs(1) - 1)
        def _():
            agg2 = acc_ref[...]
            num = agg2[:, :hp]
            den = agg2[:, hp:]
            safe_den = jnp.where(den > 0.0, den, 1.0)
            agg = jnp.where(den > 0.0, num * pl.reciprocal(safe_den, approx=True), 0.0)

            h_t = h_ref[...]
            hr_t = _ln_relu(h_t, g_ref[...], b_ref[...], inv_hid)
            conv_in = (agg + hr_t).astype(jnp.bfloat16)      # GENConv root residual

            # MLP: Linear(H->2H) -> BatchNorm (identity, eval) -> ReLU -> Linear(2H->H)
            m1 = jnp.dot(conv_in, w1_ref[...],
                         preferred_element_type=jnp.float32) + b1_ref[...]
            m1 = jnp.maximum(m1, 0.0).astype(jnp.bfloat16)
            m2 = jnp.dot(m1, w2_ref[...],
                         preferred_element_type=jnp.float32) + b2_ref[...]

            h_new = h_t + m2                                  # 'res+' residual
            if with_classifier:
                o_ref[...] = jnp.dot(h_new.astype(jnp.bfloat16), wc_ref[...],
                                     preferred_element_type=jnp.float32) + bc_ref[...]
            else:
                o_ref[...] = h_new

    return kernel


# ------------------------------- wrapper ---------------------------------------------
def bayesian_deeper_gcn(x, adj, params):
    n, in_c = x.shape
    hid = params["wenc"].shape[1]
    out_c = params["wcls"].shape[1]

    tm = _pick_row_tile(n)
    tk = tm                                   # source (K) tile of the aggregation matmul
    np_ = _round_up(max(n, tm), tm)
    cp = _round_up(in_c, LANE)
    hp = _round_up(hid, LANE)
    op = _round_up(out_c, LANE)
    rows = np_ // tm
    ksteps = np_ // tk

    f32, bf16 = jnp.float32, jnp.bfloat16

    xp = _pad2(x, np_, cp)
    # adjacency counts stored as int8 in HBM (halves the dominant A DMA stream)
    adjp = jnp.clip(_pad2(adj, np_, np_), 0, 127).astype(jnp.int8)

    wenc = _pad2(params["wenc"], cp, hp).astype(bf16)
    benc = _pad2(params["benc"], 1, hp).astype(f32)
    wcls = _pad2(params["wcls"], hp, op).astype(bf16)
    bcls = _pad2(params["bcls"], 1, op).astype(f32)

    vmem_limit = _vmem_limit_bytes()
    cparams1 = pltpu.CompilerParams(
        dimension_semantics=("parallel",), vmem_limit_bytes=vmem_limit)
    cparams2 = pltpu.CompilerParams(
        dimension_semantics=("parallel", "arbitrary"), vmem_limit_bytes=vmem_limit)

    def const_spec(shape):
        # grid-invariant operand (weights/bias/scale); tiny after the K-tiled restructure
        return pl.BlockSpec(shape, lambda *args: (0,) * len(shape))

    def row_spec1(cols):
        return pl.BlockSpec((tm, cols), lambda i: (i, 0))

    prepass0 = _make_prepass_kernel(hp, hid, with_encoder=True)
    prepass = _make_prepass_kernel(hp, hid, with_encoder=False)

    h = None
    out = None
    for l in range(N_LAYERS):
        lng = _pad2(params["lng"][l:l + 1], 1, hp).astype(f32)
        lnb = _pad2(params["lnb"][l:l + 1], 1, hp).astype(f32)
        w1 = _pad2(params["w1"][l], hp, 2 * hp).astype(bf16)
        b1 = _pad2(params["b1"][l:l + 1], 1, 2 * hp).astype(f32)
        w2 = _pad2(params["w2"][l], 2 * hp, hp).astype(bf16)
        b2 = _pad2(params["b2"][l:l + 1], 1, hp).astype(f32)

        # ---- message pre-pass: msgcat[src] = [e*msg, e] computed once per layer ------
        if l == 0:
            h, msgcat = pl.pallas_call(
                prepass0,
                grid=(rows,),
                in_specs=[row_spec1(cp), const_spec((cp, hp)), const_spec((1, hp)),
                          const_spec((1, hp)), const_spec((1, hp))],
                out_specs=[row_spec1(hp), row_spec1(2 * hp)],
                out_shape=(jax.ShapeDtypeStruct((np_, hp), f32),
                           jax.ShapeDtypeStruct((np_, 2 * hp), bf16)),
                compiler_params=cparams1,
            )(xp, wenc, benc, lng, lnb)
        else:
            msgcat = pl.pallas_call(
                prepass,
                grid=(rows,),
                in_specs=[row_spec1(hp), const_spec((1, hp)), const_spec((1, hp))],
                out_specs=row_spec1(2 * hp),
                out_shape=jax.ShapeDtypeStruct((np_, 2 * hp), bf16),
                compiler_params=cparams1,
            )(h, lng, lnb)

        # ---- K-tiled aggregation + GENConv MLP + res+ residual -----------------------
        last = (l == N_LAYERS - 1)
        layer_kernel = _make_layer_kernel(hp, hid, with_classifier=last)
        in_specs = [
            pl.BlockSpec((tm, hp), lambda i, k: (i, 0)),         # h destination-row tile
            pl.BlockSpec((tm, tk), lambda i, k: (i, k)),         # A tile (int8)
            pl.BlockSpec((tk, 2 * hp), lambda i, k: (k, 0)),     # msgcat source tile
            const_spec((1, hp)), const_spec((1, hp)),
            const_spec((hp, 2 * hp)), const_spec((1, 2 * hp)),
            const_spec((2 * hp, hp)), const_spec((1, hp)),
        ]
        args = [h, adjp, msgcat, lng, lnb, w1, b1, w2, b2]
        if last:
            in_specs += [const_spec((hp, op)), const_spec((1, op))]
            args += [wcls, bcls]
            out_cols = op
        else:
            out_cols = hp

        result = pl.pallas_call(
            layer_kernel,
            grid=(rows, ksteps),
            in_specs=in_specs,
            out_specs=pl.BlockSpec((tm, out_cols), lambda i, k: (i, 0)),
            out_shape=jax.ShapeDtypeStruct((np_, out_cols), f32),
            scratch_shapes=[pltpu.VMEM((tm, 2 * hp), f32)],      # num|den accumulator
            compiler_params=cparams2,
        )(*args)

        if last:
            out = result
        else:
            h = result

    return out[:n, :out_c]


# -------------- pure-JAX reference (mirrors the kernel's bf16 matmul casts) -----------
def reference(x, adj, p):
    bf = lambda a: a.astype(jnp.bfloat16)
    dot = lambda a, b: jnp.dot(bf(a), bf(b), preferred_element_type=jnp.float32)
    h = dot(x, p["wenc"]) + p["benc"]
    for l in range(N_LAYERS):
        mu = jnp.mean(h, axis=-1, keepdims=True)
        var = jnp.mean((h - mu) ** 2, axis=-1, keepdims=True)
        hn = (h - mu) * jax.lax.rsqrt(var + LN_EPS) * p["lng"][l] + p["lnb"][l]
        hr = jnp.maximum(hn, 0.0)
        msg = hr + GEN_EPS
        e = jnp.exp(jnp.minimum(msg, MSG_CLAMP))
        num = dot(adj, e * msg)
        den = dot(adj, e)
        agg = jnp.where(den > 0.0, num / jnp.where(den > 0.0, den, 1.0), 0.0)
        ci = agg + hr
        m1 = jnp.maximum(dot(ci, p["w1"][l]) + p["b1"][l], 0.0)
        h = h + dot(m1, p["w2"][l]) + p["b2"][l]
    return dot(h, p["wcls"]) + p["bcls"]


def init_params(key, in_c, hid, out_c):
    ks = jax.random.split(key, 8)
    s = 0.1
    return {
        "wenc": s * jax.random.normal(ks[0], (in_c, hid), jnp.float32),
        "benc": s * jax.random.normal(ks[1], (1, hid), jnp.float32),
        "lng": jnp.ones((N_LAYERS, hid), jnp.float32),
        "lnb": jnp.zeros((N_LAYERS, hid), jnp.float32),
        "w1": s * jax.random.normal(ks[2], (N_LAYERS, hid, 2 * hid), jnp.float32),
        "b1": s * jax.random.normal(ks[3], (N_LAYERS, 2 * hid), jnp.float32),
        "w2": s * jax.random.normal(ks[4], (N_LAYERS, 2 * hid, hid), jnp.float32),
        "b2": s * jax.random.normal(ks[5], (N_LAYERS, hid), jnp.float32),
        "wcls": s * jax.random.normal(ks[6], (hid, out_c), jnp.float32),
        "bcls": s * jax.random.normal(ks[7], (1, out_c), jnp.float32),
    }


if __name__ == "__main__":
    key = jax.random.PRNGKey(0)
    N, IN_C, HID, OUT_C, E = 200, 4, 32, 8, 800   # N pads to 256 -> 2 row tiles, 2 K tiles

    kx, ke, kp = jax.random.split(key, 3)
    x = jax.random.normal(kx, (N, IN_C), jnp.float32)
    edge_index = jax.random.randint(ke, (2, E), 0, N)       # row 0 = src, row 1 = dst

    # dense adjacency counts: A[dst, src] += 1 for each edge
    adj = jnp.zeros((N, N), jnp.float32).at[edge_index[1], edge_index[0]].add(1.0)

    params = init_params(kp, IN_C, HID, OUT_C)

    out = bayesian_deeper_gcn(x, adj, params)
    jax.block_until_ready(out)

    ref = reference(x, adj, params)
    # tolerance covers approx-reciprocal, bf16 matmuls and accumulation-order differences
    np.testing.assert_allclose(np.asarray(out), np.asarray(ref), rtol=5e-2, atol=5e-2)

    print("KERNEL_OK")
</pallas_src>

<mosaic_0001>
module attributes {stable_mosaic.version = 11 : i64} {
  func.func @kernel(%arg0: i32, %arg1: memref<128x128xf32, #tpu.memory_space<vmem>>, %arg2: memref<128x128xbf16, #tpu.memory_space<vmem>>, %arg3: memref<1x128xf32, #tpu.memory_space<vmem>>, %arg4: memref<1x128xf32, #tpu.memory_space<vmem>>, %arg5: memref<1x128xf32, #tpu.memory_space<vmem>>, %arg6: memref<128x128xf32, #tpu.memory_space<vmem>>, %arg7: memref<128x256xbf16, #tpu.memory_space<vmem>>) attributes {dimension_semantics = [#tpu.dimension_semantics<parallel>], iteration_bounds = array<i64: 2>, scalar_prefetch = 0 : i64, scratch_operands = 0 : i64, tpu.core_type = #tpu.core_type<tc>, window_params = [{transform_indices = @transform_0, window_bounds = array<i64: 128, 128>}, {pipeline_mode = #tpu.pipeline_mode<synchronous>, transform_indices = @transform_1, window_bounds = array<i64: 128, 128>}, {pipeline_mode = #tpu.pipeline_mode<synchronous>, transform_indices = @transform_2, window_bounds = array<i64: 1, 128>}, {pipeline_mode = #tpu.pipeline_mode<synchronous>, transform_indices = @transform_3, window_bounds = array<i64: 1, 128>}, {pipeline_mode = #tpu.pipeline_mode<synchronous>, transform_indices = @transform_4, window_bounds = array<i64: 1, 128>}, {transform_indices = @transform_5, window_bounds = array<i64: 128, 128>}, {transform_indices = @transform_6, window_bounds = array<i64: 128, 256>}]} {
    %c0 = arith.constant 0 : index
    %c0_0 = arith.constant 0 : index
    %0 = vector.load %arg1[%c0, %c0_0] : memref<128x128xf32, #tpu.memory_space<vmem>>, vector<128x128xf32>
    %1 = arith.truncf %0 : vector<128x128xf32> to vector<128x128xbf16>
    %c0_1 = arith.constant 0 : index
    %c0_2 = arith.constant 0 : index
    %2 = vector.load %arg2[%c0_1, %c0_2] : memref<128x128xbf16, #tpu.memory_space<vmem>>, vector<128x128xbf16>
    %cst = arith.constant dense<0.000000e+00> : vector<128x128xf32>
    %3 = tpu.matmul %1, %2, %cst {dimension_numbers = #tpu.dot_dimension_numbers<[1], [0], [0], [1], [0, 0, 1, 1], [], []>} : vector<128x128xbf16>, vector<128x128xbf16>, vector<128x128xf32> -> vector<128x128xf32>
    %c0_3 = arith.constant 0 : index
    %c0_4 = arith.constant 0 : index
    %4 = vector.load %arg3[%c0_3, %c0_4] : memref<1x128xf32, #tpu.memory_space<vmem>>, vector<1x128xf32>
    %5 = vector.broadcast %4 : vector<1x128xf32> to vector<128x128xf32>
    %6 = arith.addf %3, %5 : vector<128x128xf32>
    %c0_5 = arith.constant 0 : index
    %c0_6 = arith.constant 0 : index
    %7 = vector.load %arg6[%c0_5, %c0_6] : memref<128x128xf32, #tpu.memory_space<vmem>>, vector<128x128xf32>
    tpu.vector_store %arg6[%c0_5, %c0_6], %6 {strides = array<i32>} : memref<128x128xf32, #tpu.memory_space<vmem>>, vector<128x128xf32>,
    %c0_7 = arith.constant 0 : index
    %c0_8 = arith.constant 0 : index
    %8 = vector.load %arg4[%c0_7, %c0_8] : memref<1x128xf32, #tpu.memory_space<vmem>>, vector<1x128xf32>
    %c0_9 = arith.constant 0 : index
    %c0_10 = arith.constant 0 : index
    %9 = vector.load %arg5[%c0_9, %c0_10] : memref<1x128xf32, #tpu.memory_space<vmem>>, vector<1x128xf32>
    %cst_11 = arith.constant dense<0.000000e+00> : vector<128xf32>
    %10 = vector.multi_reduction <add>, %6, %cst_11 [1] : vector<128x128xf32> to vector<128xf32>
    %11 = vector.shape_cast %10 : vector<128xf32> to vector<128x1xf32>
    %cst_12 = arith.constant 3.125000e-02 : f32
    %12 = vector.broadcast %cst_12 : f32 to vector<128x1xf32>
    %13 = arith.mulf %11, %12 : vector<128x1xf32>
    %14 = arith.mulf %6, %6 : vector<128x128xf32>
    %cst_13 = arith.constant dense<0.000000e+00> : vector<128xf32>
    %15 = vector.multi_reduction <add>, %14, %cst_13 [1] : vector<128x128xf32> to vector<128xf32>
    %16 = vector.shape_cast %15 : vector<128xf32> to vector<128x1xf32>
    %cst_14 = arith.constant 3.125000e-02 : f32
    %17 = vector.broadcast %cst_14 : f32 to vector<128x1xf32>
    %18 = arith.mulf %16, %17 : vector<128x1xf32>
    %19 = arith.mulf %13, %13 : vector<128x1xf32>
    %20 = arith.subf %18, %19 : vector<128x1xf32>
    %cst_15 = arith.constant 0.000000e+00 : f32
    %21 = vector.broadcast %cst_15 : f32 to vector<128x1xf32>
    %22 = arith.maximumf %20, %21 : vector<128x1xf32>
    %23 = vector.broadcast %13 : vector<128x1xf32> to vector<128x128xf32>
    %24 = arith.subf %6, %23 : vector<128x128xf32>
    %cst_16 = arith.constant 9.99999974E-6 : f32
    %25 = vector.broadcast %cst_16 : f32 to vector<128x1xf32>
    %26 = arith.addf %22, %25 : vector<128x1xf32>
    %27 = math.rsqrt %26 : vector<128x1xf32>
    %28 = vector.broadcast %27 : vector<128x1xf32> to vector<128x128xf32>
    %29 = arith.mulf %24, %28 : vector<128x128xf32>
    %30 = vector.broadcast %8 : vector<1x128xf32> to vector<128x128xf32>
    %31 = arith.mulf %29, %30 : vector<128x128xf32>
    %32 = vector.broadcast %9 : vector<1x128xf32> to vector<128x128xf32>
    %33 = arith.addf %31, %32 : vector<128x128xf32>
    %cst_17 = arith.constant 0.000000e+00 : f32
    %34 = vector.broadcast %cst_17 : f32 to vector<128x128xf32>
    %35 = arith.maximumf %33, %34 : vector<128x128xf32>
    %cst_18 = arith.constant 1.000000e-07 : f32
    %36 = vector.broadcast %cst_18 : f32 to vector<128x128xf32>
    %37 = arith.addf %35, %36 : vector<128x128xf32>
    %cst_19 = arith.constant 4.000000e+01 : f32
    %38 = vector.broadcast %cst_19 : f32 to vector<128x128xf32>
    %39 = arith.minimumf %37, %38 : vector<128x128xf32>
    %40 = math.exp %39 : vector<128x128xf32>
    %41 = arith.mulf %40, %37 : vector<128x128xf32>
    %42 = arith.truncf %41 : vector<128x128xf32> to vector<128x128xbf16>
    %c0_20 = arith.constant 0 : index
    %c0_21 = arith.constant 0 : index
    %43 = vector.load %arg7[%c0_20, %c0_21] : memref<128x256xbf16, #tpu.memory_space<vmem>>, vector<128x128xbf16>
    tpu.vector_store %arg7[%c0_20, %c0_21], %42 {strides = array<i32>} : memref<128x256xbf16, #tpu.memory_space<vmem>>, vector<128x128xbf16>,
    %44 = arith.truncf %40 : vector<128x128xf32> to vector<128x128xbf16>
    %c0_22 = arith.constant 0 : index
    %c128 = arith.constant 128 : index
    %45 = vector.load %arg7[%c0_22, %c128] : memref<128x256xbf16, #tpu.memory_space<vmem>>, vector<128x128xbf16>
    tpu.vector_store %arg7[%c0_22, %c128], %44 {strides = array<i32>} : memref<128x256xbf16, #tpu.memory_space<vmem>>, vector<128x128xbf16>,
    return
  }
  func.func @transform_0(%arg0: i32) -> (i32, i32) {
    %c0_i32 = arith.constant 0 : i32
    %c0_i32_0 = arith.constant 0 : i32
    return %arg0, %c0_i32 : i32, i32
  }
  func.func @transform_1(%arg0: i32) -> (i32, i32) {
    %c0_i32 = arith.constant 0 : i32
    %c0_i32_0 = arith.constant 0 : i32
    %c0_i32_1 = arith.constant 0 : i32
    return %c0_i32, %c0_i32_0 : i32, i32
  }
  func.func @transform_2(%arg0: i32) -> (i32, i32) {
    %c0_i32 = arith.constant 0 : i32
    %c0_i32_0 = arith.constant 0 : i32
    %c0_i32_1 = arith.constant 0 : i32
    return %c0_i32, %c0_i32_0 : i32, i32
  }
  func.func @transform_3(%arg0: i32) -> (i32, i32) {
    %c0_i32 = arith.constant 0 : i32
    %c0_i32_0 = arith.constant 0 : i32
    %c0_i32_1 = arith.constant 0 : i32
    return %c0_i32, %c0_i32_0 : i32, i32
  }
  func.func @transform_4(%arg0: i32) -> (i32, i32) {
    %c0_i32 = arith.constant 0 : i32
    %c0_i32_0 = arith.constant 0 : i32
    %c0_i32_1 = arith.constant 0 : i32
    return %c0_i32, %c0_i32_0 : i32, i32
  }
  func.func @transform_5(%arg0: i32) -> (i32, i32) {
    %c0_i32 = arith.constant 0 : i32
    %c0_i32_0 = arith.constant 0 : i32
    return %arg0, %c0_i32 : i32, i32
  }
  func.func @transform_6(%arg0: i32) -> (i32, i32) {
    %c0_i32 = arith.constant 0 : i32
    %c0_i32_0 = arith.constant 0 : i32
    return %arg0, %c0_i32 : i32, i32
  }
}

</mosaic_0001>

<llo_original>
// kernel: tpu_custom_call.1
$region0: #{tpu_custom_call.1}
  #allocation0 [shape = 'u32[]', space=smem, size = 0x4, offset = 0x4, fixed_abs, tag = 'smem constant byte address 0x4 - core index']
  #allocation1 [shape = 'u32[144,128]{1,0:T(1,128)}', space=vmem, size = 0x12000, scoped, tag = 'internal scratch']
  %s0 = inlined_call_operand.hbm [shape: f32[256,128], index: 0, kind: input, shape index: {}]
  %s1 = inlined_call_operand.hbm [shape: bf16[128,128], index: 1, kind: input, shape index: {}]
  %s2 = inlined_call_operand.vmem [shape: f32[1,128], index: 2, kind: input, shape index: {}]
  %s3 = inlined_call_operand.vmem [shape: f32[1,128], index: 3, kind: input, shape index: {}]
  %s4 = inlined_call_operand.vmem [shape: f32[1,128], index: 4, kind: input, shape index: {}]
  %s5 = inlined_call_operand.hbm [shape: f32[256,128], index: 5, kind: output, shape index: {0}]
  %s6 = inlined_call_operand.hbm [shape: bf16[256,256], index: 6, kind: output, shape index: {1}]
  %7 = xla_tuple %s5, %s6
  %s8 = sld [smem:[#allocation0]]
  $region69: #{tpu_custom_call.1} parent=0
    _
  %s10 = ssub.s32 1, %s8
  %s11 = scalar_select 0, %s10, %s8
  $region1: #{tpu_custom_call.1} parent=0
    #allocation2 [shape = 'u8[131072]{0}', space=vmem, size = 0x20000, scoped, tag = 'input window, operand 0']
    #allocation3 [shape = 's32[2]{0}', space=sflag, size = 0x8, scoped, tag = 'scoped memory for tpu_custom_call.1']
    #allocation4 [shape = 's32[2]{0}', space=sflag, size = 0x8, scoped, tag = 'scoped memory for tpu_custom_call.1']
    #allocation5 [shape = 'u8[32768]{0}', space=vmem, size = 0x8000, scoped, tag = 'input window, operand 1, single buffered']
    #allocation6 [shape = 's32[1]{0}', space=sflag, size = 0x4, scoped, tag = 'scoped memory for tpu_custom_call.1']
    #allocation7 [shape = 'u8[131072]{0}', space=vmem, size = 0x20000, scoped, tag = 'output window, operand 0']
    #allocation8 [shape = 'u8[131072]{0}', space=vmem, size = 0x20000, scoped, tag = 'output window, operand 1']
    #allocation9 [shape = 's32[2]{0}', space=sflag, size = 0x8, scoped, tag = 'scoped memory for tpu_custom_call.1']
    %12 = vsyncpa [#allocation3], 0
    %s13 = scalar_lea.sflag [#allocation3], 1
    %14 = vsyncpa %s13, 0
    %15 = vsyncpa [#allocation6], 0
    %16 = vsyncpa [#allocation4], 0
    %s17 = scalar_lea.sflag [#allocation4], 1
    %18 = vsyncpa %s17, 0
    %19 = vsyncpa [#allocation9], 0
    %s20 = scalar_lea.sflag [#allocation9], 1
    %21 = vsyncpa %s20, 0
    loop: start=0, step=1, limit=4
    $region2: #{tpu_custom_call.1} parent=1 // loop_pre_header
      _
    $region3: #{tpu_custom_call.1} parent=1 // loop_header
      %s23 = sphi 0, %s27
      %p24 = scmp.ge.s32.totalorder %s23, 4
      %s33 = sphi 0, %s35
      %s36 = sphi 0, %s33
      %s37 = sphi 0, %s36
      %s53 = sphi 0, %s37
      %s57 = sphi 0, %s57
      %s59 = sphi 0, %s57
      %s60 = sphi 0, %s59
      %s74 = sphi 0, %s60
      %s78 = sphi 0, %s78
      %s80 = sphi 0, %s78
      %s81 = sphi 0, %s80
      %s95 = sphi 0, %s81
      %s99 = sphi 0, %s99
      %s101 = sphi 0, %s99
      %s102 = sphi 0, %s101
      %s116 = sphi 0, %s102
      %s120 = sphi 0, %s120
      %s122 = sphi 0, %s120
      %s123 = sphi 0, %s122
      %s137 = sphi 0, %s123
      %s143 = sphi 0, %s145
      %s146 = sphi 0, %s143
      %s147 = sphi 0, %s146
      %s163 = sphi 0, %s147
      %s169 = sphi 0, %s171
      %s172 = sphi 0, %s169
      %s173 = sphi 0, %s172
      %s189 = sphi 0, %s173
    $region4: #{tpu_custom_call.1} parent=1 // loop_header_branch
      %26 = sbr.rel (%p24) target = $region8
    $region5: #{tpu_custom_call.1} parent=1 // loop_body
      %s28 = ssub.s32 %s23, 1
      %s29 = ssub.s32 %s23, 2
      %s30 = sadd.s32 %s23, 1
      %s31 = ssub.s32 %s23, %s30
      %p32 = scmp.eq.s32.totalorder %s31, 0
      %s34 = sadd.s32 %s33, 1
      %s35 = scalar_select %p32, %s33, %s34
      %p38 = pneg %p32
      %p39 = scmp.eq.s32.totalorder %s23, 1
      %p40 = por %p38, %p39
      %p41 = scmp.ne.s32.totalorder %s33, %s36
      %p42 = scmp.eq.s32.totalorder %s23, 0
      %p43 = por %p41, %p42
      %p44 = scmp.ne.s32.totalorder %s33, %s36
      %p45 = scmp.eq.s32.totalorder %s28, 1
      %p46 = por %p44, %p45
      %p47 = scmp.ne.s32.totalorder %s36, %s37
      %p48 = scmp.eq.s32.totalorder %s28, 0
      %p49 = por %p47, %p48
      %p50 = scmp.ne.s32.totalorder %s36, %s37
      %p51 = scmp.eq.s32.totalorder %s29, 1
      %p52 = por %p50, %p51
      %p54 = scmp.ne.s32.totalorder %s37, %s53
      %p55 = scmp.eq.s32.totalorder %s29, 0
      %p56 = por %p54, %p55
      %s58 = sadd.s32 %s57, 1
      %p61 = scmp.eq.s32.totalorder %s23, 1
      %p62 = scmp.ne.s32.totalorder %s57, %s59
      %p63 = scmp.eq.s32.totalorder %s23, 0
      %p64 = por %p62, %p63
      %p65 = scmp.ne.s32.totalorder %s57, %s59
      %p66 = scmp.eq.s32.totalorder %s28, 1
      %p67 = por %p65, %p66
      %p68 = scmp.ne.s32.totalorder %s59, %s60
      %p69 = scmp.eq.s32.totalorder %s28, 0
      %p70 = por %p68, %p69
      %p71 = scmp.ne.s32.totalorder %s59, %s60
      %p72 = scmp.eq.s32.totalorder %s29, 1
      %p73 = por %p71, %p72
      %p75 = scmp.ne.s32.totalorder %s60, %s74
      %p76 = scmp.eq.s32.totalorder %s29, 0
      %p77 = por %p75, %p76
      %s79 = sadd.s32 %s78, 1
      %p82 = scmp.eq.s32.totalorder %s23, 1
      %p83 = scmp.ne.s32.totalorder %s78, %s80
      %p84 = scmp.eq.s32.totalorder %s23, 0
      %p85 = por %p83, %p84
      %p86 = scmp.ne.s32.totalorder %s78, %s80
      %p87 = scmp.eq.s32.totalorder %s28, 1
      %p88 = por %p86, %p87
      %p89 = scmp.ne.s32.totalorder %s80, %s81
      %p90 = scmp.eq.s32.totalorder %s28, 0
      %p91 = por %p89, %p90
      %p92 = scmp.ne.s32.totalorder %s80, %s81
      %p93 = scmp.eq.s32.totalorder %s29, 1
      %p94 = por %p92, %p93
      %p96 = scmp.ne.s32.totalorder %s81, %s95
      %p97 = scmp.eq.s32.totalorder %s29, 0
      %p98 = por %p96, %p97
      %s100 = sadd.s32 %s99, 1
      %p103 = scmp.eq.s32.totalorder %s23, 1
      %p104 = scmp.ne.s32.totalorder %s99, %s101
      %p105 = scmp.eq.s32.totalorder %s23, 0
      %p106 = por %p104, %p105
      %p107 = scmp.ne.s32.totalorder %s99, %s101
      %p108 = scmp.eq.s32.totalorder %s28, 1
      %p109 = por %p107, %p108
      %p110 = scmp.ne.s32.totalorder %s101, %s102
      %p111 = scmp.eq.s32.totalorder %s28, 0
      %p112 = por %p110, %p111
      %p113 = scmp.ne.s32.totalorder %s101, %s102
      %p114 = scmp.eq.s32.totalorder %s29, 1
      %p115 = por %p113, %p114
      %p117 = scmp.ne.s32.totalorder %s102, %s116
      %p118 = scmp.eq.s32.totalorder %s29, 0
      %p119 = por %p117, %p118
      %s121 = sadd.s32 %s120, 1
      %p124 = scmp.eq.s32.totalorder %s23, 1
      %p125 = scmp.ne.s32.totalorder %s120, %s122
      %p126 = scmp.eq.s32.totalorder %s23, 0
      %p127 = por %p125, %p126
      %p128 = scmp.ne.s32.totalorder %s120, %s122
      %p129 = scmp.eq.s32.totalorder %s28, 1
      %p130 = por %p128, %p129
      %p131 = scmp.ne.s32.totalorder %s122, %s123
      %p132 = scmp.eq.s32.totalorder %s28, 0
      %p133 = por %p131, %p132
      %p134 = scmp.ne.s32.totalorder %s122, %s123
      %p135 = scmp.eq.s32.totalorder %s29, 1
      %p136 = por %p134, %p135
      %p138 = scmp.ne.s32.totalorder %s123, %s137
      %p139 = scmp.eq.s32.totalorder %s29, 0
      %p140 = por %p138, %p139
      %s141 = ssub.s32 %s23, %s30
      %p142 = scmp.eq.s32.totalorder %s141, 0
      %s144 = sadd.s32 %s143, 1
      %s145 = scalar_select %p142, %s143, %s144
      %p148 = pneg %p142
      %p149 = scmp.eq.s32.totalorder %s23, 1
      %p150 = por %p148, %p149
      %p151 = scmp.ne.s32.totalorder %s143, %s146
      %p152 = scmp.eq.s32.totalorder %s23, 0
      %p153 = por %p151, %p152
      %p154 = scmp.ne.s32.totalorder %s143, %s146
      %p155 = scmp.eq.s32.totalorder %s28, 1
      %p156 = por %p154, %p155
      %p157 = scmp.ne.s32.totalorder %s146, %s147
      %p158 = scmp.eq.s32.totalorder %s28, 0
      %p159 = por %p157, %p158
      %p160 = scmp.ne.s32.totalorder %s146, %s147
      %p161 = scmp.eq.s32.totalorder %s29, 1
      %p162 = por %p160, %p161
      %p164 = scmp.ne.s32.totalorder %s147, %s163
      %p165 = scmp.eq.s32.totalorder %s29, 0
      %p166 = por %p164, %p165
      %s167 = ssub.s32 %s23, %s30
      %p168 = scmp.eq.s32.totalorder %s167, 0
      %s170 = sadd.s32 %s169, 1
      %s171 = scalar_select %p168, %s169, %s170
      %p174 = pneg %p168
      %p175 = scmp.eq.s32.totalorder %s23, 1
      %p176 = por %p174, %p175
      %p177 = scmp.ne.s32.totalorder %s169, %s172
      %p178 = scmp.eq.s32.totalorder %s23, 0
      %p179 = por %p177, %p178
      %p180 = scmp.ne.s32.totalorder %s169, %s172
      %p181 = scmp.eq.s32.totalorder %s28, 1
      %p182 = por %p180, %p181
      %p183 = scmp.ne.s32.totalorder %s172, %s173
      %p184 = scmp.eq.s32.totalorder %s28, 0
      %p185 = por %p183, %p184
      %p186 = scmp.ne.s32.totalorder %s172, %s173
      %p187 = scmp.eq.s32.totalorder %s29, 1
      %p188 = por %p186, %p187
      %p190 = scmp.ne.s32.totalorder %s173, %s189
      %p191 = scmp.eq.s32.totalorder %s29, 0
      %p192 = por %p190, %p191
      %p193 = scmp.le.s32.totalorder 1, %s23
      %p194 = scmp.lt.s32.totalorder %s23, 3
      %p195 = pnand %p193, %p194
      %p196 = pneg %p195
      // Predicated region
      $region9: #{tpu_custom_call.1} parent=5 // pred_check
        _
      $region10: #{tpu_custom_call.1} parent=5 // pred_check_branch
        %198 = sbr.rel (%p195) target = $region12
      $region11: #{tpu_custom_call.1} parent=5 // pred_region
        %s199 = ssub.s32 %s23, 1
        // Predicated region
        $region13: #{tpu_custom_call.1} parent=11 // pred_check
          %p200 = pneg %p70
        $region14: #{tpu_custom_call.1} parent=11 // pred_check_branch
          %202 = sbr.rel (%p200) target = $region16
        $region15: #{tpu_custom_call.1} parent=11 // pred_region
          %s204 = ssub.s32 1024, 1024
          %205 = vsyncadd [#allocation6], %s204
          %s206 = sshll.u32 [#allocation5], 4
          %s207 = int_to_ptr.vmem [resolvable:$true] %s206
          %212 = dma.hbm_to_vmem [thread:$0]  %s1, 1024, %s207, [#allocation6], 64, 64, 4
        $region16: #{tpu_custom_call.1} parent=11 // pred_fallthru
          _
        // Predicated region
        $region17: #{tpu_custom_call.1} parent=11 // pred_check
          %p213 = pneg %p91
        $region18: #{tpu_custom_call.1} parent=11 // pred_check_branch
          %215 = sbr.rel (%p213) target = $region20
        $region19: #{tpu_custom_call.1} parent=11 // pred_region
          _
        $region20: #{tpu_custom_call.1} parent=11 // pred_fallthru
          _
        // Predicated region
        $region21: #{tpu_custom_call.1} parent=11 // pred_check
          %p216 = pneg %p112
        $region22: #{tpu_custom_call.1} parent=11 // pred_check_branch
          %218 = sbr.rel (%p216) target = $region24
        $region23: #{tpu_custom_call.1} parent=11 // pred_region
          _
        $region24: #{tpu_custom_call.1} parent=11 // pred_fallthru
          _
        // Predicated region
        $region25: #{tpu_custom_call.1} parent=11 // pred_check
          %p219 = pneg %p133
        $region26: #{tpu_custom_call.1} parent=11 // pred_check_branch
          %221 = sbr.rel (%p219) target = $region28
        $region27: #{tpu_custom_call.1} parent=11 // pred_region
          _
        $region28: #{tpu_custom_call.1} parent=11 // pred_fallthru
          _
      $region12: #{tpu_custom_call.1} parent=5 // pred_fallthru
        _
      %p222 = scmp.lt.s32.totalorder %s23, 2
      // Predicated region
      $region29: #{tpu_custom_call.1} parent=5 // pred_check
        %p223 = pneg %p222
      $region30: #{tpu_custom_call.1} parent=5 // pred_check_branch
        %225 = sbr.rel (%p223) target = $region32
      $region31: #{tpu_custom_call.1} parent=5 // pred_region
        // Predicated region
        $region33: #{tpu_custom_call.1} parent=31 // pred_check
          %p226 = pneg %p43
        $region34: #{tpu_custom_call.1} parent=31 // pred_check_branch
          %228 = sbr.rel (%p226) target = $region36
        $region35: #{tpu_custom_call.1} parent=31 // pred_region
          %s229 = sand.u32 %s33, 1
          %s230 = scalar_lea.sflag [#allocation3], %s229
          %s231 = sand.u32 %s33, 1
          %s232 = smul.addr %s231, 128
          %s233 = scalar_lea.vmem [#allocation2], %s232
          %s234 = smul.u32 16, %s23
          %s236 = ssub.s32 2048, 2048
          %237 = vsyncadd %s230, %s236
          %s238 = smul.addr %s234, 128
          %s239 = scalar_lea.hbm %s0, %s238
          %s240 = sshll.u32 %s233, 4
          %s241 = int_to_ptr.vmem [resolvable:$true] %s240
          %246 = dma.hbm_to_vmem [thread:$0]  %s239, 2048, %s241, %s230, 128, 128, 8
        $region36: #{tpu_custom_call.1} parent=31 // pred_fallthru
          _
      $region32: #{tpu_custom_call.1} parent=5 // pred_fallthru
        _
      %p247 = scmp.le.s32.totalorder 1, %s23
      %p248 = scmp.lt.s32.totalorder %s23, 3
      %p249 = pnand %p247, %p248
      %p250 = pneg %p249
      // Predicated region
      $region37: #{tpu_custom_call.1} parent=5 // pred_check
        _
      $region38: #{tpu_custom_call.1} parent=5 // pred_check_branch
        %252 = sbr.rel (%p249) target = $region40
      $region39: #{tpu_custom_call.1} parent=5 // pred_region
        %s253 = ssub.s32 %s23, 1
        %s254 = sand.u32 %s36, 1
        %s255 = scalar_lea.sflag [#allocation3], %s254
        %s256 = sand.u32 %s36, 1
        %s257 = smul.addr %s256, 128
        %s258 = scalar_lea.vmem [#allocation2], %s257
        // Predicated region
        $region41: #{tpu_custom_call.1} parent=39 // pred_check
          %p259 = pneg %p49
        $region42: #{tpu_custom_call.1} parent=39 // pred_check_branch
          %261 = sbr.rel (%p259) target = $region44
        $region43: #{tpu_custom_call.1} parent=39 // pred_region
          %262 = dma.done %s255, 2048
        $region44: #{tpu_custom_call.1} parent=39 // pred_fallthru
          _
        // Predicated region
        $region45: #{tpu_custom_call.1} parent=39 // pred_check
          %p263 = pneg %p70
        $region46: #{tpu_custom_call.1} parent=39 // pred_check_branch
          %265 = sbr.rel (%p263) target = $region48
        $region47: #{tpu_custom_call.1} parent=39 // pred_region
          %266 = dma.done [#allocation6], 1024
        $region48: #{tpu_custom_call.1} parent=39 // pred_fallthru
          _
        %s267 = sand.u32 %s36, 1
        %s268 = scalar_lea.sflag [#allocation3], %s267
        %s269 = sand.u32 %s36, 1
        %s270 = smul.addr %s269, 128
        %s271 = scalar_lea.vmem [#allocation2], %s270
        %p272 = pneg %p49
        %p273 = pneg %p46
        %p274 = pneg %p70
        %p275 = pneg %p67
        %p276 = pneg %p91
        %p277 = pneg %p88
        %p278 = pneg %p112
        %p279 = pneg %p109
        %p280 = pneg %p133
        %p281 = pneg %p130
        %p282 = pneg %p159
        %p283 = pneg %p156
        %s284 = sand.u32 %s146, 1
        %s285 = scalar_lea.sflag [#allocation4], %s284
        %s286 = sand.u32 %s146, 1
        %s287 = smul.addr %s286, 128
        %s288 = scalar_lea.vmem [#allocation7], %s287
        %p289 = pneg %p185
        %p290 = pneg %p182
        %s291 = sand.u32 %s172, 1
        %s292 = scalar_lea.sflag [#allocation9], %s291
        %s293 = sand.u32 %s172, 1
        %s294 = smul.addr %s293, 128
        %s295 = scalar_lea.vmem [#allocation8], %s294
        %s296 = smul.u32 16, %s28
        %s297 = smul.u32 16, %s28
        %s298 = smul.u32 16, %s28
        %v300 = vld [vmem:[%s258] sm:$0xff]
        %v301 = vld [vmem:[%s258 + $0x8] sm:$0xff]
        %v302 = vld [vmem:[%s258 + $0x10] sm:$0xff]
        %v303 = vld [vmem:[%s258 + $0x18] sm:$0xff]
        %v304 = vld [vmem:[%s258 + $0x20] sm:$0xff]
        %v305 = vld [vmem:[%s258 + $0x28] sm:$0xff]
        %v306 = vld [vmem:[%s258 + $0x30] sm:$0xff]
        %v307 = vld [vmem:[%s258 + $0x38] sm:$0xff]
        %v308 = vld [vmem:[%s258 + $0x40] sm:$0xff]
        %v309 = vld [vmem:[%s258 + $0x48] sm:$0xff]
        %v310 = vld [vmem:[%s258 + $0x50] sm:$0xff]
        %v311 = vld [vmem:[%s258 + $0x58] sm:$0xff]
        %v312 = vld [vmem:[%s258 + $0x60] sm:$0xff]
        %v313 = vld [vmem:[%s258 + $0x68] sm:$0xff]
        %v314 = vld [vmem:[%s258 + $0x70] sm:$0xff]
        %v315 = vld [vmem:[%s258 + $0x78] sm:$0xff]
        %v316 = vpack.c.bf16 %v301, %v300
        %v317 = vpack.c.bf16 %v303, %v302
        %v318 = vpack.c.bf16 %v305, %v304
        %v319 = vpack.c.bf16 %v307, %v306
        %v320 = vpack.c.bf16 %v309, %v308
        %v321 = vpack.c.bf16 %v311, %v310
        %v322 = vpack.c.bf16 %v313, %v312
        %v323 = vpack.c.bf16 %v315, %v314
        %v324 = vld [vmem:[#allocation5] sm:$0xf]
        %v325 = vld [vmem:[#allocation5 + $0x4] sm:$0xf]
        %v326 = vld [vmem:[#allocation5 + $0x8] sm:$0xf]
        %v327 = vld [vmem:[#allocation5 + $0xc] sm:$0xf]
        %v328 = vld [vmem:[#allocation5 + $0x10] sm:$0xf]
        %v329 = vld [vmem:[#allocation5 + $0x14] sm:$0xf]
        %v330 = vld [vmem:[#allocation5 + $0x18] sm:$0xf]
        %v331 = vld [vmem:[#allocation5 + $0x1c] sm:$0xf]
        %v332 = vld [vmem:[#allocation5 + $0x20] sm:$0xf]
        %v333 = vld [vmem:[#allocation5 + $0x24] sm:$0xf]
        %v334 = vld [vmem:[#allocation5 + $0x28] sm:$0xf]
        %v335 = vld [vmem:[#allocation5 + $0x2c] sm:$0xf]
        %v336 = vld [vmem:[#allocation5 + $0x30] sm:$0xf]
        %v337 = vld [vmem:[#allocation5 + $0x34] sm:$0xf]
        %v338 = vld [vmem:[#allocation5 + $0x38] sm:$0xf]
        %v339 = vld [vmem:[#allocation5 + $0x3c] sm:$0xf]
        %v340 = vld [vmem:[%s2] sm:$0x1]
        %v342 = vlaneseq
        %v343 = vshrl.u32 %v342, 7
        %v344 = vsub.s32 0, %v343
        %v345 = vrot.slane %v340, %v344
        %v363 = vunpack.c.l.b16 %v324
        %v364 = vunpack.c.l.b16 %v325
        %v365 = vunpack.c.l.b16 %v326
        %v366 = vunpack.c.l.b16 %v327
        %v367 = vunpack.c.l.b16 %v328
        %v368 = vunpack.c.l.b16 %v329
        %v369 = vunpack.c.l.b16 %v330
        %v370 = vunpack.c.l.b16 %v331
        %v371 = vunpack.c.l.b16 %v332
        %v372 = vunpack.c.l.b16 %v333
        %v373 = vunpack.c.l.b16 %v334
        %v374 = vunpack.c.l.b16 %v335
        %v375 = vunpack.c.l.b16 %v336
        %v376 = vunpack.c.l.b16 %v337
        %v377 = vunpack.c.l.b16 %v338
        %v378 = vunpack.c.l.b16 %v339
        %v379 = vpack.c.b16 %v364, %v363
        %v380 = vpack.c.b16 %v366, %v365
        %v381 = vpack.c.b16 %v368, %v367
        %v382 = vpack.c.b16 %v370, %v369
        %v383 = vpack.c.b16 %v372, %v371
        %v384 = vpack.c.b16 %v374, %v373
        %v385 = vpack.c.b16 %v376, %v375
        %v386 = vpack.c.b16 %v378, %v377
        %395 = vmatprep.subr.bf16.mxu0 0
        %396 = vmatpush1.bf16.msra.mxu0 %v386
        %397 = vmatprep.subr.bf16.mxu0 0
        %398 = vmatpush1.bf16.msra.mxu0 %v385
        %399 = vmatprep.subr.bf16.mxu0 0
        %400 = vmatpush1.bf16.msra.mxu0 %v384
        %401 = vmatprep.subr.bf16.mxu0 0
        %402 = vmatpush1.bf16.msra.mxu0 %v383
        %403 = vmatprep.subr.bf16.mxu0 0
        %404 = vmatpush1.bf16.msra.mxu0 %v382
        %405 = vmatprep.subr.bf16.mxu0 0
        %406 = vmatpush1.bf16.msra.mxu0 %v381
        %407 = vmatprep.subr.bf16.mxu0 0
        %408 = vmatpush1.bf16.msra.mxu0 %v380
        %409 = vmatprep.subr.bf16.mxu0 0
        %410 = vmatpush1.bf16.msra.mxu0 %v379
        %411 = vmatprep.subr.bf16.mxu0 0
        %412 = vmatpush2.bf16.msra.mxu0 0
        %413 = vmatprep.subr.bf16.mxu0 0
        %414 = vmatpush2.bf16.msra.mxu0 0
        %415 = vmatprep.subr.bf16.mxu0 0
        %416 = vmatpush2.bf16.msra.mxu0 0
        %417 = vmatprep.subr.bf16.mxu0 0
        %418 = vmatpush2.bf16.msra.mxu0 0
        %419 = vmatprep.subr.bf16.mxu0 0
        %420 = vmatpush2.bf16.msra.mxu0 0
        %421 = vmatprep.subr.bf16.mxu0 0
        %422 = vmatpush2.bf16.msra.mxu0 0
        %423 = vmatprep.subr.bf16.mxu0 0
        %424 = vmatpush2.bf16.msra.mxu0 0
        %425 = vmatprep.subr.bf16.mxu0 0
        %426 = vmatpush2.bf16.msra.mxu0 0
        %427 = vmatprep.mubr.bf16.mxu0 0
        %428 = vmatmul.mubr.bf16.gmra.mxu0 %v316
        %v429 = vpop.f32.mrf.mxu0
        %v430 = vadd.f32 %v345, %v429
        %v431 = vpop.f32.mrf.mxu0
        %v432 = vpop.f32.mrf.mxu0
        %v433 = vadd.f32 %v345, %v432
        %v434 = vpop.f32.mrf.mxu0
        %435 = vmatprep.mubr.bf16.mxu0 0
        %436 = vmatmul.mubr.bf16.gmra.mxu0 %v317
        %v437 = vpop.f32.mrf.mxu0
        %v438 = vadd.f32 %v345, %v437
        %v439 = vpop.f32.mrf.mxu0
        %v440 = vpop.f32.mrf.mxu0
        %v441 = vadd.f32 %v345, %v440
        %v442 = vpop.f32.mrf.mxu0
        %443 = vmatprep.mubr.bf16.mxu0 0
        %444 = vmatmul.mubr.bf16.gmra.mxu0 %v318
        %v445 = vpop.f32.mrf.mxu0
        %v446 = vadd.f32 %v345, %v445
        %v447 = vpop.f32.mrf.mxu0
        %v448 = vpop.f32.mrf.mxu0
        %v449 = vadd.f32 %v345, %v448
        %v450 = vpop.f32.mrf.mxu0
        %451 = vmatprep.mubr.bf16.mxu0 0
        %452 = vmatmul.mubr.bf16.gmra.mxu0 %v319
        %v453 = vpop.f32.mrf.mxu0
        %v454 = vadd.f32 %v345, %v453
        %v455 = vpop.f32.mrf.mxu0
        %v456 = vpop.f32.mrf.mxu0
        %v457 = vadd.f32 %v345, %v456
        %v458 = vpop.f32.mrf.mxu0
        %459 = vmatprep.mubr.bf16.mxu0 0
        %460 = vmatmul.mubr.bf16.gmra.mxu0 %v320
        %v461 = vpop.f32.mrf.mxu0
        %v462 = vadd.f32 %v345, %v461
        %v463 = vpop.f32.mrf.mxu0
        %v464 = vpop.f32.mrf.mxu0
        %v465 = vadd.f32 %v345, %v464
        %v466 = vpop.f32.mrf.mxu0
        %467 = vmatprep.mubr.bf16.mxu0 0
        %468 = vmatmul.mubr.bf16.gmra.mxu0 %v321
        %v469 = vpop.f32.mrf.mxu0
        %v470 = vadd.f32 %v345, %v469
        %v471 = vpop.f32.mrf.mxu0
        %v472 = vpop.f32.mrf.mxu0
        %v473 = vadd.f32 %v345, %v472
        %v474 = vpop.f32.mrf.mxu0
        %475 = vmatprep.mubr.bf16.mxu0 0
        %476 = vmatmul.mubr.bf16.gmra.mxu0 %v322
        %v477 = vpop.f32.mrf.mxu0
        %v478 = vadd.f32 %v345, %v477
        %v479 = vpop.f32.mrf.mxu0
        %v480 = vpop.f32.mrf.mxu0
        %v481 = vadd.f32 %v345, %v480
        %v482 = vpop.f32.mrf.mxu0
        %483 = vmatprep.mubr.bf16.mxu0 0
        %484 = vmatmul.mubr.bf16.gmra.mxu0 %v323
        %v485 = vpop.f32.mrf.mxu0
        %v486 = vadd.f32 %v345, %v485
        %v487 = vpop.f32.mrf.mxu0
        %v488 = vpop.f32.mrf.mxu0
        %v489 = vadd.f32 %v345, %v488
        %v490 = vpop.f32.mrf.mxu0
        %491 = vdwg.mxu0
        %492 = vst [vmem:[%s288] sm:$0xff] %v430
        %493 = vst [vmem:[%s288 + $0x8] sm:$0xff] %v433
        %494 = vst [vmem:[%s288 + $0x10] sm:$0xff] %v438
        %495 = vst [vmem:[%s288 + $0x18] sm:$0xff] %v441
        %496 = vst [vmem:[%s288 + $0x20] sm:$0xff] %v446
        %497 = vst [vmem:[%s288 + $0x28] sm:$0xff] %v449
        %498 = vst [vmem:[%s288 + $0x30] sm:$0xff] %v454
        %499 = vst [vmem:[%s288 + $0x38] sm:$0xff] %v457
        %500 = vst [vmem:[%s288 + $0x40] sm:$0xff] %v462
        %501 = vst [vmem:[%s288 + $0x48] sm:$0xff] %v465
        %502 = vst [vmem:[%s288 + $0x50] sm:$0xff] %v470
        %503 = vst [vmem:[%s288 + $0x58] sm:$0xff] %v473
        %504 = vst [vmem:[%s288 + $0x60] sm:$0xff] %v478
        %505 = vst [vmem:[%s288 + $0x68] sm:$0xff] %v481
        %506 = vst [vmem:[%s288 + $0x70] sm:$0xff] %v486
        %507 = vst [vmem:[%s288 + $0x78] sm:$0xff] %v489
        %v508 = vld [vmem:[%s3] sm:$0x1]
        %v509 = vld [vmem:[%s4] sm:$0x1]
        %510 = vadd.xlane.f32.xlu0 %v430
        %v511 = vpop.xlane.xlu0 %510
        %512 = vadd.xlane.f32.xlu0 %v433
        %v513 = vpop.xlane.xlu0 %512
        %514 = vadd.xlane.f32.xlu0 %v438
        %v515 = vpop.xlane.xlu0 %514
        %516 = vadd.xlane.f32.xlu0 %v441
        %v517 = vpop.xlane.xlu0 %516
        %518 = vadd.xlane.f32.xlu0 %v446
        %v519 = vpop.xlane.xlu0 %518
        %520 = vadd.xlane.f32.xlu0 %v449
        %v521 = vpop.xlane.xlu0 %520
        %522 = vadd.xlane.f32.xlu0 %v454
        %v523 = vpop.xlane.xlu0 %522
        %524 = vadd.xlane.f32.xlu0 %v457
        %v525 = vpop.xlane.xlu0 %524
        %526 = vadd.xlane.f32.xlu0 %v462
        %v527 = vpop.xlane.xlu0 %526
        %528 = vadd.xlane.f32.xlu0 %v465
        %v529 = vpop.xlane.xlu0 %528
        %530 = vadd.xlane.f32.xlu0 %v470
        %v531 = vpop.xlane.xlu0 %530
        %532 = vadd.xlane.f32.xlu0 %v473
        %v533 = vpop.xlane.xlu0 %532
        %534 = vadd.xlane.f32.xlu0 %v478
        %v535 = vpop.xlane.xlu0 %534
        %536 = vadd.xlane.f32.xlu0 %v481
        %v537 = vpop.xlane.xlu0 %536
        %538 = vadd.xlane.f32.xlu0 %v486
        %v539 = vpop.xlane.xlu0 %538
        %540 = vadd.xlane.f32.xlu0 %v489
        %v541 = vpop.xlane.xlu0 %540
        %v542 = vmul.f32 %v511, 0.03125
        %v543 = vmul.f32 %v513, 0.03125
        %v544 = vmul.f32 %v515, 0.03125
        %v545 = vmul.f32 %v517, 0.03125
        %v546 = vmul.f32 %v519, 0.03125
        %v547 = vmul.f32 %v521, 0.03125
        %v548 = vmul.f32 %v523, 0.03125
        %v549 = vmul.f32 %v525, 0.03125
        %v550 = vmul.f32 %v527, 0.03125
        %v551 = vmul.f32 %v529, 0.03125
        %v552 = vmul.f32 %v531, 0.03125
        %v553 = vmul.f32 %v533, 0.03125
        %v554 = vmul.f32 %v535, 0.03125
        %v555 = vmul.f32 %v537, 0.03125
        %v556 = vmul.f32 %v539, 0.03125
        %v557 = vmul.f32 %v541, 0.03125
        %v558 = vmul.f32 %v430, %v430
        %v559 = vmul.f32 %v433, %v433
        %v560 = vmul.f32 %v438, %v438
        %v561 = vmul.f32 %v441, %v441
        %v562 = vmul.f32 %v446, %v446
        %v563 = vmul.f32 %v449, %v449
        %v564 = vmul.f32 %v454, %v454
        %v565 = vmul.f32 %v457, %v457
        %v566 = vmul.f32 %v462, %v462
        %v567 = vmul.f32 %v465, %v465
        %v568 = vmul.f32 %v470, %v470
        %v569 = vmul.f32 %v473, %v473
        %v570 = vmul.f32 %v478, %v478
        %v571 = vmul.f32 %v481, %v481
        %v572 = vmul.f32 %v486, %v486
        %v573 = vmul.f32 %v489, %v489
        %574 = vadd.xlane.f32.xlu0 %v558
        %v575 = vpop.xlane.xlu0 %574
        %576 = vadd.xlane.f32.xlu0 %v559
        %v577 = vpop.xlane.xlu0 %576
        %578 = vadd.xlane.f32.xlu0 %v560
        %v579 = vpop.xlane.xlu0 %578
        %580 = vadd.xlane.f32.xlu0 %v561
        %v581 = vpop.xlane.xlu0 %580
        %582 = vadd.xlane.f32.xlu0 %v562
        %v583 = vpop.xlane.xlu0 %582
        %584 = vadd.xlane.f32.xlu0 %v563
        %v585 = vpop.xlane.xlu0 %584
        %586 = vadd.xlane.f32.xlu0 %v564
        %v587 = vpop.xlane.xlu0 %586
        %588 = vadd.xlane.f32.xlu0 %v565
        %v589 = vpop.xlane.xlu0 %588
        %590 = vadd.xlane.f32.xlu0 %v566
        %v591 = vpop.xlane.xlu0 %590
        %592 = vadd.xlane.f32.xlu0 %v567
        %v593 = vpop.xlane.xlu0 %592
        %594 = vadd.xlane.f32.xlu0 %v568
        %v595 = vpop.xlane.xlu0 %594
        %596 = vadd.xlane.f32.xlu0 %v569
        %v597 = vpop.xlane.xlu0 %596
        %598 = vadd.xlane.f32.xlu0 %v570
        %v599 = vpop.xlane.xlu0 %598
        %600 = vadd.xlane.f32.xlu0 %v571
        %v601 = vpop.xlane.xlu0 %600
        %602 = vadd.xlane.f32.xlu0 %v572
        %v603 = vpop.xlane.xlu0 %602
        %604 = vadd.xlane.f32.xlu0 %v573
        %v605 = vpop.xlane.xlu0 %604
        %v606 = vmul.f32 %v575, 0.03125
        %v607 = vmul.f32 %v577, 0.03125
        %v608 = vmul.f32 %v579, 0.03125
        %v609 = vmul.f32 %v581, 0.03125
        %v610 = vmul.f32 %v583, 0.03125
        %v611 = vmul.f32 %v585, 0.03125
        %v612 = vmul.f32 %v587, 0.03125
        %v613 = vmul.f32 %v589, 0.03125
        %v614 = vmul.f32 %v591, 0.03125
        %v615 = vmul.f32 %v593, 0.03125
        %v616 = vmul.f32 %v595, 0.03125
        %v617 = vmul.f32 %v597, 0.03125
        %v618 = vmul.f32 %v599, 0.03125
        %v619 = vmul.f32 %v601, 0.03125
        %v620 = vmul.f32 %v603, 0.03125
        %v621 = vmul.f32 %v605, 0.03125
        %v622 = vmul.f32 %v542, %v542
        %v623 = vmul.f32 %v543, %v543
        %v624 = vmul.f32 %v544, %v544
        %v625 = vmul.f32 %v545, %v545
        %v626 = vmul.f32 %v546, %v546
        %v627 = vmul.f32 %v547, %v547
        %v628 = vmul.f32 %v548, %v548
        %v629 = vmul.f32 %v549, %v549
        %v630 = vmul.f32 %v550, %v550
        %v631 = vmul.f32 %v551, %v551
        %v632 = vmul.f32 %v552, %v552
        %v633 = vmul.f32 %v553, %v553
        %v634 = vmul.f32 %v554, %v554
        %v635 = vmul.f32 %v555, %v555
        %v636 = vmul.f32 %v556, %v556
        %v637 = vmul.f32 %v557, %v557
        %v638 = vsub.f32 %v606, %v622
        %v639 = vsub.f32 %v607, %v623
        %v640 = vsub.f32 %v608, %v624
        %v641 = vsub.f32 %v609, %v625
        %v642 = vsub.f32 %v610, %v626
        %v643 = vsub.f32 %v611, %v627
        %v644 = vsub.f32 %v612, %v628
        %v645 = vsub.f32 %v613, %v629
        %v646 = vsub.f32 %v614, %v630
        %v647 = vsub.f32 %v615, %v631
        %v648 = vsub.f32 %v616, %v632
        %v649 = vsub.f32 %v617, %v633
        %v650 = vsub.f32 %v618, %v634
        %v651 = vsub.f32 %v619, %v635
        %v652 = vsub.f32 %v620, %v636
        %v653 = vsub.f32 %v621, %v637
        %v654 = vmax.f32 %v638, 0.0
        %v655 = vmax.f32 %v639, 0.0
        %v656 = vmax.f32 %v640, 0.0
        %v657 = vmax.f32 %v641, 0.0
        %v658 = vmax.f32 %v642, 0.0
        %v659 = vmax.f32 %v643, 0.0
        %v660 = vmax.f32 %v644, 0.0
        %v661 = vmax.f32 %v645, 0.0
        %v662 = vmax.f32 %v646, 0.0
        %v663 = vmax.f32 %v647, 0.0
        %v664 = vmax.f32 %v648, 0.0
        %v665 = vmax.f32 %v649, 0.0
        %v666 = vmax.f32 %v650, 0.0
        %v667 = vmax.f32 %v651, 0.0
        %v668 = vmax.f32 %v652, 0.0
        %v669 = vmax.f32 %v653, 0.0
        %v670 = vsub.f32 %v430, %v542
        %v671 = vsub.f32 %v433, %v543
        %v672 = vsub.f32 %v438, %v544
        %v673 = vsub.f32 %v441, %v545
        %v674 = vsub.f32 %v446, %v546
        %v675 = vsub.f32 %v449, %v547
        %v676 = vsub.f32 %v454, %v548
        %v677 = vsub.f32 %v457, %v549
        %v678 = vsub.f32 %v462, %v550
        %v679 = vsub.f32 %v465, %v551
        %v680 = vsub.f32 %v470, %v552
        %v681 = vsub.f32 %v473, %v553
        %v682 = vsub.f32 %v478, %v554
        %v683 = vsub.f32 %v481, %v555
        %v684 = vsub.f32 %v486, %v556
        %v685 = vsub.f32 %v489, %v557
        %v686 = vadd.f32 %v654, 1e-05
        %v687 = vadd.f32 %v655, 1e-05
        %v688 = vadd.f32 %v656, 1e-05
        %v689 = vadd.f32 %v657, 1e-05
        %v690 = vadd.f32 %v658, 1e-05
        %v691 = vadd.f32 %v659, 1e-05
        %v692 = vadd.f32 %v660, 1e-05
        %v693 = vadd.f32 %v661, 1e-05
        %v694 = vadd.f32 %v662, 1e-05
        %v695 = vadd.f32 %v663, 1e-05
        %v696 = vadd.f32 %v664, 1e-05
        %v697 = vadd.f32 %v665, 1e-05
        %v698 = vadd.f32 %v666, 1e-05
        %v699 = vadd.f32 %v667, 1e-05
        %v700 = vadd.f32 %v668, 1e-05
        %v701 = vadd.f32 %v669, 1e-05
        %v702 = vrsqrt.pop %v686
        %v703 = vrsqrt.pop %v687
        %v704 = vrsqrt.pop %v688
        %v705 = vrsqrt.pop %v689
        %v706 = vrsqrt.pop %v690
        %v707 = vrsqrt.pop %v691
        %v708 = vrsqrt.pop %v692
        %v709 = vrsqrt.pop %v693
        %v710 = vrsqrt.pop %v694
        %v711 = vrsqrt.pop %v695
        %v712 = vrsqrt.pop %v696
        %v713 = vrsqrt.pop %v697
        %v714 = vrsqrt.pop %v698
        %v715 = vrsqrt.pop %v699
        %v716 = vrsqrt.pop %v700
        %v717 = vrsqrt.pop %v701
        %v718 = vmul.f32 %v670, %v702
        %v719 = vmul.f32 %v671, %v703
        %v720 = vmul.f32 %v672, %v704
        %v721 = vmul.f32 %v673, %v705
        %v722 = vmul.f32 %v674, %v706
        %v723 = vmul.f32 %v675, %v707
        %v724 = vmul.f32 %v676, %v708
        %v725 = vmul.f32 %v677, %v709
        %v726 = vmul.f32 %v678, %v710
        %v727 = vmul.f32 %v679, %v711
        %v728 = vmul.f32 %v680, %v712
        %v729 = vmul.f32 %v681, %v713
        %v730 = vmul.f32 %v682, %v714
        %v731 = vmul.f32 %v683, %v715
        %v732 = vmul.f32 %v684, %v716
        %v733 = vmul.f32 %v685, %v717
        %v735 = vlaneseq
        %v736 = vshrl.u32 %v735, 7
        %v737 = vsub.s32 0, %v736
        %v738 = vrot.slane %v508, %v737
        %v740 = vmul.f32 %v718, %v738
        %v741 = vmul.f32 %v719, %v738
        %v742 = vmul.f32 %v720, %v738
        %v743 = vmul.f32 %v721, %v738
        %v744 = vmul.f32 %v722, %v738
        %v745 = vmul.f32 %v723, %v738
        %v746 = vmul.f32 %v724, %v738
        %v747 = vmul.f32 %v725, %v738
        %v748 = vmul.f32 %v726, %v738
        %v749 = vmul.f32 %v727, %v738
        %v750 = vmul.f32 %v728, %v738
        %v751 = vmul.f32 %v729, %v738
        %v752 = vmul.f32 %v730, %v738
        %v753 = vmul.f32 %v731, %v738
        %v754 = vmul.f32 %v732, %v738
        %v755 = vmul.f32 %v733, %v738
        %v757 = vlaneseq
        %v758 = vshrl.u32 %v757, 7
        %v759 = vsub.s32 0, %v758
        %v760 = vrot.slane %v509, %v759
        %v762 = vadd.f32 %v740, %v760
        %v763 = vadd.f32 %v741, %v760
        %v764 = vadd.f32 %v742, %v760
        %v765 = vadd.f32 %v743, %v760
        %v766 = vadd.f32 %v744, %v760
        %v767 = vadd.f32 %v745, %v760
        %v768 = vadd.f32 %v746, %v760
        %v769 = vadd.f32 %v747, %v760
        %v770 = vadd.f32 %v748, %v760
        %v771 = vadd.f32 %v749, %v760
        %v772 = vadd.f32 %v750, %v760
        %v773 = vadd.f32 %v751, %v760
        %v774 = vadd.f32 %v752, %v760
        %v775 = vadd.f32 %v753, %v760
        %v776 = vadd.f32 %v754, %v760
        %v777 = vadd.f32 %v755, %v760
        %v778 = vmax.f32 %v762, 0.0
        %v779 = vmax.f32 %v763, 0.0
        %v780 = vmax.f32 %v764, 0.0
        %v781 = vmax.f32 %v765, 0.0
        %v782 = vmax.f32 %v766, 0.0
        %v783 = vmax.f32 %v767, 0.0
        %v784 = vmax.f32 %v768, 0.0
        %v785 = vmax.f32 %v769, 0.0
        %v786 = vmax.f32 %v770, 0.0
        %v787 = vmax.f32 %v771, 0.0
        %v788 = vmax.f32 %v772, 0.0
        %v789 = vmax.f32 %v773, 0.0
        %v790 = vmax.f32 %v774, 0.0
        %v791 = vmax.f32 %v775, 0.0
        %v792 = vmax.f32 %v776, 0.0
        %v793 = vmax.f32 %v777, 0.0
        %v794 = vadd.f32 %v778, 1e-07
        %v795 = vadd.f32 %v779, 1e-07
        %v796 = vadd.f32 %v780, 1e-07
        %v797 = vadd.f32 %v781, 1e-07
        %v798 = vadd.f32 %v782, 1e-07
        %v799 = vadd.f32 %v783, 1e-07
        %v800 = vadd.f32 %v784, 1e-07
        %v801 = vadd.f32 %v785, 1e-07
        %v802 = vadd.f32 %v786, 1e-07
        %v803 = vadd.f32 %v787, 1e-07
        %v804 = vadd.f32 %v788, 1e-07
        %v805 = vadd.f32 %v789, 1e-07
        %v806 = vadd.f32 %v790, 1e-07
        %v807 = vadd.f32 %v791, 1e-07
        %v808 = vadd.f32 %v792, 1e-07
        %v809 = vadd.f32 %v793, 1e-07
        %v810 = vmin.f32 %v794, 40.0
        %v811 = vmin.f32 %v795, 40.0
        %v812 = vmin.f32 %v796, 40.0
        %v813 = vmin.f32 %v797, 40.0
        %v814 = vmin.f32 %v798, 40.0
        %v815 = vmin.f32 %v799, 40.0
        %v816 = vmin.f32 %v800, 40.0
        %v817 = vmin.f32 %v801, 40.0
        %v818 = vmin.f32 %v802, 40.0
        %v819 = vmin.f32 %v803, 40.0
        %v820 = vmin.f32 %v804, 40.0
        %v821 = vmin.f32 %v805, 40.0
        %v822 = vmin.f32 %v806, 40.0
        %v823 = vmin.f32 %v807, 40.0
        %v824 = vmin.f32 %v808, 40.0
        %v825 = vmin.f32 %v809, 40.0
        %v826 = vmul.f32 %v810, 1.442695
        %v827 = vpow.pop %v826
        %v828 = vmul.f32 %v811, 1.442695
        %v829 = vpow.pop %v828
        %v830 = vmul.f32 %v812, 1.442695
        %v831 = vpow.pop %v830
        %v832 = vmul.f32 %v813, 1.442695
        %v833 = vpow.pop %v832
        %v834 = vmul.f32 %v814, 1.442695
        %v835 = vpow.pop %v834
        %v836 = vmul.f32 %v815, 1.442695
        %v837 = vpow.pop %v836
        %v838 = vmul.f32 %v816, 1.442695
        %v839 = vpow.pop %v838
        %v840 = vmul.f32 %v817, 1.442695
        %v841 = vpow.pop %v840
        %v842 = vmul.f32 %v818, 1.442695
        %v843 = vpow.pop %v842
        %v844 = vmul.f32 %v819, 1.442695
        %v845 = vpow.pop %v844
        %v846 = vmul.f32 %v820, 1.442695
        %v847 = vpow.pop %v846
        %v848 = vmul.f32 %v821, 1.442695
        %v849 = vpow.pop %v848
        %v850 = vmul.f32 %v822, 1.442695
        %v851 = vpow.pop %v850
        %v852 = vmul.f32 %v823, 1.442695
        %v853 = vpow.pop %v852
        %v854 = vmul.f32 %v824, 1.442695
        %v855 = vpow.pop %v854
        %v856 = vmul.f32 %v825, 1.442695
        %v857 = vpow.pop %v856
        %v858 = vmul.f32 %v827, %v794
        %v859 = vmul.f32 %v829, %v795
        %v860 = vmul.f32 %v831, %v796
        %v861 = vmul.f32 %v833, %v797
        %v862 = vmul.f32 %v835, %v798
        %v863 = vmul.f32 %v837, %v799
        %v864 = vmul.f32 %v839, %v800
        %v865 = vmul.f32 %v841, %v801
        %v866 = vmul.f32 %v843, %v802
        %v867 = vmul.f32 %v845, %v803
        %v868 = vmul.f32 %v847, %v804
        %v869 = vmul.f32 %v849, %v805
        %v870 = vmul.f32 %v851, %v806
        %v871 = vmul.f32 %v853, %v807
        %v872 = vmul.f32 %v855, %v808
        %v873 = vmul.f32 %v857, %v809
        %v874 = vpack.c.bf16 %v859, %v858
        %v875 = vpack.c.bf16 %v861, %v860
        %v876 = vpack.c.bf16 %v863, %v862
        %v877 = vpack.c.bf16 %v865, %v864
        %v878 = vpack.c.bf16 %v867, %v866
        %v879 = vpack.c.bf16 %v869, %v868
        %v880 = vpack.c.bf16 %v871, %v870
        %v881 = vpack.c.bf16 %v873, %v872
        %v890 = vunpack.c.l.b16 %v874
        %v891 = vunpack.c.h.b16 %v874
        %v892 = vunpack.c.l.b16 %v875
        %v893 = vunpack.c.h.b16 %v875
        %v894 = vunpack.c.l.b16 %v876
        %v895 = vunpack.c.h.b16 %v876
        %v896 = vunpack.c.l.b16 %v877
        %v897 = vunpack.c.h.b16 %v877
        %v898 = vunpack.c.l.b16 %v878
        %v899 = vunpack.c.h.b16 %v878
        %v900 = vunpack.c.l.b16 %v879
        %v901 = vunpack.c.h.b16 %v879
        %v902 = vunpack.c.l.b16 %v880
        %v903 = vunpack.c.h.b16 %v880
        %v904 = vunpack.c.l.b16 %v881
        %v905 = vunpack.c.h.b16 %v881
        %v906 = vpack.c.b16 %v890, %v890
        %v907 = vpack.c.b16 %v891, %v891
        %v908 = vpack.c.b16 %v892, %v892
        %v909 = vpack.c.b16 %v893, %v893
        %v910 = vpack.c.b16 %v894, %v894
        %v911 = vpack.c.b16 %v895, %v895
        %v912 = vpack.c.b16 %v896, %v896
        %v913 = vpack.c.b16 %v897, %v897
        %v914 = vpack.c.b16 %v898, %v898
        %v915 = vpack.c.b16 %v899, %v899
        %v916 = vpack.c.b16 %v900, %v900
        %v917 = vpack.c.b16 %v901, %v901
        %v918 = vpack.c.b16 %v902, %v902
        %v919 = vpack.c.b16 %v903, %v903
        %v920 = vpack.c.b16 %v904, %v904
        %v921 = vpack.c.b16 %v905, %v905
        %938 = vst [vmem:[%s295] sm:$0xf] %v906
        %939 = vst [vmem:[%s295 + $0x8] sm:$0xf] %v907
        %940 = vst [vmem:[%s295 + $0x10] sm:$0xf] %v908
        %941 = vst [vmem:[%s295 + $0x18] sm:$0xf] %v909
        %942 = vst [vmem:[%s295 + $0x20] sm:$0xf] %v910
        %943 = vst [vmem:[%s295 + $0x28] sm:$0xf] %v911
        %944 = vst [vmem:[%s295 + $0x30] sm:$0xf] %v912
        %945 = vst [vmem:[%s295 + $0x38] sm:$0xf] %v913
        %946 = vst [vmem:[%s295 + $0x40] sm:$0xf] %v914
        %947 = vst [vmem:[%s295 + $0x48] sm:$0xf] %v915
        %948 = vst [vmem:[%s295 + $0x50] sm:$0xf] %v916
        %949 = vst [vmem:[%s295 + $0x58] sm:$0xf] %v917
        %950 = vst [vmem:[%s295 + $0x60] sm:$0xf] %v918
        %951 = vst [vmem:[%s295 + $0x68] sm:$0xf] %v919
        %952 = vst [vmem:[%s295 + $0x70] sm:$0xf] %v920
        %953 = vst [vmem:[%s295 + $0x78] sm:$0xf] %v921
        %v954 = vpack.c.bf16 %v829, %v827
        %v955 = vpack.c.bf16 %v833, %v831
        %v956 = vpack.c.bf16 %v837, %v835
        %v957 = vpack.c.bf16 %v841, %v839
        %v958 = vpack.c.bf16 %v845, %v843
        %v959 = vpack.c.bf16 %v849, %v847
        %v960 = vpack.c.bf16 %v853, %v851
        %v961 = vpack.c.bf16 %v857, %v855
        %v970 = vunpack.c.l.b16 %v954
        %v971 = vunpack.c.h.b16 %v954
        %v972 = vunpack.c.l.b16 %v955
        %v973 = vunpack.c.h.b16 %v955
        %v974 = vunpack.c.l.b16 %v956
        %v975 = vunpack.c.h.b16 %v956
        %v976 = vunpack.c.l.b16 %v957
        %v977 = vunpack.c.h.b16 %v957
        %v978 = vunpack.c.l.b16 %v958
        %v979 = vunpack.c.h.b16 %v958
        %v980 = vunpack.c.l.b16 %v959
        %v981 = vunpack.c.h.b16 %v959
        %v982 = vunpack.c.l.b16 %v960
        %v983 = vunpack.c.h.b16 %v960
        %v984 = vunpack.c.l.b16 %v961
        %v985 = vunpack.c.h.b16 %v961
        %v986 = vpack.c.b16 %v970, %v970
        %v987 = vpack.c.b16 %v971, %v971
        %v988 = vpack.c.b16 %v972, %v972
        %v989 = vpack.c.b16 %v973, %v973
        %v990 = vpack.c.b16 %v974, %v974
        %v991 = vpack.c.b16 %v975, %v975
        %v992 = vpack.c.b16 %v976, %v976
        %v993 = vpack.c.b16 %v977, %v977
        %v994 = vpack.c.b16 %v978, %v978
        %v995 = vpack.c.b16 %v979, %v979
        %v996 = vpack.c.b16 %v980, %v980
        %v997 = vpack.c.b16 %v981, %v981
        %v998 = vpack.c.b16 %v982, %v982
        %v999 = vpack.c.b16 %v983, %v983
        %v1000 = vpack.c.b16 %v984, %v984
        %v1001 = vpack.c.b16 %v985, %v985
        %1018 = vst [vmem:[%s295 + $0x4] sm:$0xf] %v986
        %1019 = vst [vmem:[%s295 + $0xc] sm:$0xf] %v987
        %1020 = vst [vmem:[%s295 + $0x14] sm:$0xf] %v988
        %1021 = vst [vmem:[%s295 + $0x1c] sm:$0xf] %v989
        %1022 = vst [vmem:[%s295 + $0x24] sm:$0xf] %v990
        %1023 = vst [vmem:[%s295 + $0x2c] sm:$0xf] %v991
        %1024 = vst [vmem:[%s295 + $0x34] sm:$0xf] %v992
        %1025 = vst [vmem:[%s295 + $0x3c] sm:$0xf] %v993
        %1026 = vst [vmem:[%s295 + $0x44] sm:$0xf] %v994
        %1027 = vst [vmem:[%s295 + $0x4c] sm:$0xf] %v995
        %1028 = vst [vmem:[%s295 + $0x54] sm:$0xf] %v996
        %1029 = vst [vmem:[%s295 + $0x5c] sm:$0xf] %v997
        %1030 = vst [vmem:[%s295 + $0x64] sm:$0xf] %v998
        %1031 = vst [vmem:[%s295 + $0x6c] sm:$0xf] %v999
        %1032 = vst [vmem:[%s295 + $0x74] sm:$0xf] %v1000
        %1033 = vst [vmem:[%s295 + $0x7c] sm:$0xf] %v1001
        %s1034 = sand.u32 %s146, 1
        %s1035 = scalar_lea.sflag [#allocation4], %s1034
        %s1036 = sand.u32 %s146, 1
        %s1037 = smul.addr %s1036, 128
        %s1038 = scalar_lea.vmem [#allocation7], %s1037
        %s1039 = sand.u32 %s172, 1
        %s1040 = scalar_lea.sflag [#allocation9], %s1039
        %s1041 = sand.u32 %s172, 1
        %s1042 = smul.addr %s1041, 128
        %s1043 = scalar_lea.vmem [#allocation8], %s1042
        // Predicated region
        $region49: #{tpu_custom_call.1} parent=39 // pred_check
          %p1044 = pneg %p156
        $region50: #{tpu_custom_call.1} parent=39 // pred_check_branch
          %1046 = sbr.rel (%p1044) target = $region52
        $region51: #{tpu_custom_call.1} parent=39 // pred_region
          %s1047 = smul.u32 16, %s28
          %s1049 = ssub.s32 2048, 2048
          %1050 = vsyncadd %s1035, %s1049
          %s1051 = smul.addr %s1047, 128
          %s1052 = scalar_lea.hbm %s5, %s1051
          %s1053 = sshll.u32 %s1038, 4
          %s1054 = int_to_ptr.vmem [resolvable:$true] %s1053
          %1059 = dma.vmem_to_hbm [thread:$0]  %s1054, 2048, %s1052, %s1035, 128, 128, 8
        $region52: #{tpu_custom_call.1} parent=39 // pred_fallthru
          _
        // Predicated region
        $region53: #{tpu_custom_call.1} parent=39 // pred_check
          %p1060 = pneg %p182
        $region54: #{tpu_custom_call.1} parent=39 // pred_check_branch
          %1062 = sbr.rel (%p1060) target = $region56
        $region55: #{tpu_custom_call.1} parent=39 // pred_region
          %s1063 = smul.u32 16, %s28
          %s1065 = ssub.s32 2048, 2048
          %1066 = vsyncadd %s1040, %s1065
          %s1067 = smul.addr %s1063, 2
          %s1068 = smul.addr %s1067, 64
          %s1069 = scalar_lea.hbm %s6, %s1068
          %s1070 = sshll.u32 %s1043, 4
          %s1071 = int_to_ptr.vmem [resolvable:$true] %s1070
          %1076 = dma.vmem_to_hbm [thread:$0]  %s1071, 2048, %s1069, %s1040, 128, 128, 8
        $region56: #{tpu_custom_call.1} parent=39 // pred_fallthru
          _
      $region40: #{tpu_custom_call.1} parent=5 // pred_fallthru
        _
      %p1077 = scmp.le.s32.totalorder 2, %s23
      // Predicated region
      $region57: #{tpu_custom_call.1} parent=5 // pred_check
        %p1078 = pneg %p1077
      $region58: #{tpu_custom_call.1} parent=5 // pred_check_branch
        %1080 = sbr.rel (%p1078) target = $region60
      $region59: #{tpu_custom_call.1} parent=5 // pred_region
        %s1081 = ssub.s32 %s23, 2
        // Predicated region
        $region61: #{tpu_custom_call.1} parent=59 // pred_check
          %p1082 = pneg %p162
        $region62: #{tpu_custom_call.1} parent=59 // pred_check_branch
          %1084 = sbr.rel (%p1082) target = $region64
        $region63: #{tpu_custom_call.1} parent=59 // pred_region
          %s1085 = sand.u32 %s147, 1
          %s1086 = scalar_lea.sflag [#allocation4], %s1085
          %s1087 = sand.u32 %s147, 1
          %s1088 = smul.addr %s1087, 128
          %s1089 = scalar_lea.vmem [#allocation7], %s1088
          %1090 = dma.done %s1086, 2048
        $region64: #{tpu_custom_call.1} parent=59 // pred_fallthru
          _
        // Predicated region
        $region65: #{tpu_custom_call.1} parent=59 // pred_check
          %p1091 = pneg %p188
        $region66: #{tpu_custom_call.1} parent=59 // pred_check_branch
          %1093 = sbr.rel (%p1091) target = $region68
        $region67: #{tpu_custom_call.1} parent=59 // pred_region
          %s1094 = sand.u32 %s173, 1
          %s1095 = scalar_lea.sflag [#allocation9], %s1094
          %s1096 = sand.u32 %s173, 1
          %s1097 = smul.addr %s1096, 128
          %s1098 = scalar_lea.vmem [#allocation8], %s1097
          %1099 = dma.done %s1095, 2048
        $region68: #{tpu_custom_call.1} parent=59 // pred_fallthru
          _
      $region60: #{tpu_custom_call.1} parent=5 // pred_fallthru
        _
    $region6: #{tpu_custom_call.1} parent=1 // loop_footer
      %s27 = sadd.s32 1, %s23
    $region7: #{tpu_custom_call.1} parent=1 // loop_footer_branch
      %22 = sbr.rel target = $region3
    $region8: #{tpu_custom_call.1} parent=1 // loop_exit
      _
    %1100 = vsyncpa [#allocation3], 1
    %s1101 = scalar_lea.sflag [#allocation3], 1
    %1102 = vsyncpa %s1101, 1
    %1103 = vsyncpa [#allocation6], 1
    %1104 = vsyncpa [#allocation4], 1
    %s1105 = scalar_lea.sflag [#allocation4], 1
    %1106 = vsyncpa %s1105, 1
    %1107 = vsyncpa [#allocation9], 1
    %s1108 = scalar_lea.sflag [#allocation9], 1
    %1109 = vsyncpa %s1108, 1

</llo_original>
